<compile_context>
chip_gen: v6e
topology: v6e:2x2x1
jax: 0.10.0
libtpu: 0.0.40
codegen_flags: <defaults>
</compile_context>

<pallas_src>
import functools

import jax
import jax.numpy as jnp
from jax import lax
from jax.experimental import pallas as pl
from jax.experimental.pallas import tpu as pltpu

LN_EPS = 1e-5
NEG_MAX = float(-jnp.finfo(jnp.float32).max)


def _masked_xattn_kernel(x_ref, media_ref, ttime_ref, mtime_ref,
                         gamma_ref, beta_ref, wq_ref, wk_ref, wv_ref, wout_ref,
                         out_ref, o_scr_ref, *, heads, head_dim):
    Bb, T_txt, dim = x_ref.shape
    _, Tm, dim_visual = media_ref.shape
    R = Bb * T_txt            # flattened query rows in this block
    Rm = Bb * Tm              # flattened media rows in this block

    # --- LayerNorm (f32 math; x is shipped bf16 to halve its HBM->VMEM bytes) ---
    x = x_ref[...].astype(jnp.float32)                               # (Bb, T, dim)
    mean = jnp.mean(x, axis=-1, keepdims=True)
    var = jnp.mean((x - mean) ** 2, axis=-1, keepdims=True)
    xn = (x - mean) * lax.rsqrt(var + LN_EPS) * gamma_ref[...] + beta_ref[...]

    # --- head-major projections (host-reshaped weights; no swapaxes relayouts) ---
    # h is a true batch dim of the dot_general, so the result is already
    # (heads, rows, head_dim); the scale is folded into wq on the host.
    xn_h = jnp.broadcast_to(xn.astype(jnp.bfloat16).reshape(R, dim)[None],
                            (heads, R, dim))
    media_h = jnp.broadcast_to(media_ref[...].reshape(Rm, dim_visual)[None],
                               (heads, Rm, dim_visual))
    hq = jnp.einsum('hrd,hdk->hrk', xn_h, wq_ref[...],
                    preferred_element_type=jnp.float32)              # (heads, R,  hd)
    hk = jnp.einsum('hrd,hdk->hrk', media_h, wk_ref[...],
                    preferred_element_type=jnp.float32)              # (heads, Rm, hd)
    hv = jnp.einsum('hrd,hdk->hrk', media_h, wv_ref[...],
                    preferred_element_type=jnp.float32)              # (heads, Rm, hd)

    # Regroup (heads, Bb*rows, hd) -> (heads*Bb, rows, hd): leading-dim reshape only
    # (lane dim unchanged), so attention never mixes batch elements.
    G = heads * Bb
    hq = hq.astype(jnp.bfloat16).reshape(G, T_txt, head_dim)
    hk = hk.astype(jnp.bfloat16).reshape(G, Tm, head_dim)
    hv = hv.astype(jnp.bfloat16).reshape(G, Tm, head_dim)

    # --- scores for all (head, batch) groups in one batched MXU einsum ---
    sim = jnp.einsum('gik,gjk->gij', hq, hk,
                     preferred_element_type=jnp.float32)             # (G, T, Tm)

    # --- mask: built once per batch row, replicated over heads along the leading dim.
    # Fill with NEG_MAX (not an additive bias) so fully-masked rows reduce to a
    # uniform softmax, exactly matching PyTorch masked_fill + softmax semantics.
    tt = ttime_ref[...]                                              # (Bb, T, 1) int32
    attend_b = tt == mtime_ref[...].reshape(1, 1, Tm)                # (Bb, T, Tm)
    attend_g = jnp.concatenate([attend_b] * heads, axis=0)           # (G,  T, Tm)
    sim = jnp.where(attend_g, sim, NEG_MAX)
    sim = sim - jnp.max(sim, axis=-1, keepdims=True)
    e = jnp.exp(sim)
    attn = e * pl.reciprocal(jnp.sum(e, axis=-1, keepdims=True), approx=True)

    # --- attn @ v for all (head, batch) groups ---
    out_h = jnp.einsum('gij,gjk->gik', attn.astype(jnp.bfloat16), hv,
                       preferred_element_type=jnp.float32)           # (G, T, hd)

    # --- fused output projection: write each head's slab head-contiguously into a
    # (rows, inner) VMEM scratch, then ONE full-K (= inner) matmul against wout.
    for h in range(heads):                                           # static, small
        o_scr_ref[:, h * head_dim:(h + 1) * head_dim] = (
            out_h[h * Bb:(h + 1) * Bb].reshape(R, head_dim).astype(jnp.bfloat16))
    out = jnp.dot(o_scr_ref[...], wout_ref[...],
                  preferred_element_type=jnp.float32).reshape(Bb, T_txt, dim)

    # Zero text rows that precede any media — applied on the small final output
    # instead of the (G, T, Tm) attention tensor (same numerics, fewer VPU passes).
    out_ref[...] = jnp.where(tt == 0, 0.0, out)


def masked_cross_attention(x, media, media_locations, params, *,
                           heads, dim_head, compress_ratio, block_b=None):
    """x: (B, T_txt, dim); media: (B, T_img, n, dim_visual); media_locations: (B, T_txt) bool."""
    B, T_txt, dim = x.shape
    _, T_img, n, dim_visual = media.shape
    inner = dim_head * heads // compress_ratio
    head_dim = inner // heads
    scale = dim_head ** (-0.5)
    Tm = T_img * n

    if block_b is None:
        block_b = B                       # collapse the grid at small shapes
    assert B % block_b == 0
    nb = B // block_b

    # Host-side prep (one-time work moved out of the kernel).
    x_bf = x.astype(jnp.bfloat16)
    media_flat = media.reshape(B, Tm, dim_visual).astype(jnp.bfloat16)
    text_time = jnp.cumsum(media_locations.astype(jnp.int32), axis=-1)[..., None]  # (B, T, 1)
    media_time = (jnp.arange(Tm, dtype=jnp.int32) // n + 1).reshape(1, Tm)         # (1, Tm)

    gamma = params["ln_gamma"].reshape(1, dim).astype(jnp.float32)
    beta = params["ln_beta"].reshape(1, dim).astype(jnp.float32)
    # Head-major weights: (heads, d_in, head_dim); softmax scale folded into wq.
    wq_h = (params["wq"] * scale).reshape(dim, heads, head_dim) \
        .transpose(1, 0, 2).astype(jnp.bfloat16)
    wk_h = params["wkv"][:, :inner].reshape(dim_visual, heads, head_dim) \
        .transpose(1, 0, 2).astype(jnp.bfloat16)
    wv_h = params["wkv"][:, inner:].reshape(dim_visual, heads, head_dim) \
        .transpose(1, 0, 2).astype(jnp.bfloat16)
    wout = params["wout"].astype(jnp.bfloat16)                       # (inner, dim)

    kernel = functools.partial(_masked_xattn_kernel, heads=heads, head_dim=head_dim)

    return pl.pallas_call(
        kernel,
        out_shape=jax.ShapeDtypeStruct((B, T_txt, dim), jnp.float32),
        grid=(nb,),
        in_specs=[
            pl.BlockSpec((block_b, T_txt, dim), lambda i: (i, 0, 0)),
            pl.BlockSpec((block_b, Tm, dim_visual), lambda i: (i, 0, 0)),
            pl.BlockSpec((block_b, T_txt, 1), lambda i: (i, 0, 0)),
            pl.BlockSpec((1, Tm), lambda i: (0, 0)),
            pl.BlockSpec((1, dim), lambda i: (0, 0)),
            pl.BlockSpec((1, dim), lambda i: (0, 0)),
            pl.BlockSpec((heads, dim, head_dim), lambda i: (0, 0, 0)),
            pl.BlockSpec((heads, dim_visual, head_dim), lambda i: (0, 0, 0)),
            pl.BlockSpec((heads, dim_visual, head_dim), lambda i: (0, 0, 0)),
            pl.BlockSpec((inner, dim), lambda i: (0, 0)),
        ],
        out_specs=pl.BlockSpec((block_b, T_txt, dim), lambda i: (i, 0, 0)),
        scratch_shapes=[pltpu.VMEM((block_b * T_txt, inner), jnp.bfloat16)],
        compiler_params=pltpu.CompilerParams(
            dimension_semantics=("parallel",),
            # Toy working set is tiny; explicit limit left well under v7x's 64 MiB.
            vmem_limit_bytes=32 * 1024 * 1024),
    )(x_bf, media_flat, text_time, media_time, gamma, beta, wq_h, wk_h, wv_h, wout)


def reference_forward(x, media, media_locations, params, *,
                      heads, dim_head, compress_ratio):
    """Pure-JAX f32 replica of the PyTorch forward (only_attend_immediate_media=True,
    qv_norm=False, use_cached_media=False)."""
    B, T_txt, dim = x.shape
    _, T_img, n, dim_visual = media.shape
    inner = dim_head * heads // compress_ratio
    head_dim = inner // heads
    scale = dim_head ** (-0.5)

    mean = jnp.mean(x, axis=-1, keepdims=True)
    var = jnp.mean((x - mean) ** 2, axis=-1, keepdims=True)
    xn = (x - mean) / jnp.sqrt(var + LN_EPS) * params["ln_gamma"] + params["ln_beta"]

    q = xn @ params["wq"]                                    # (B, T_txt, inner)
    media_f = media.reshape(B, T_img * n, dim_visual)
    kv = media_f @ params["wkv"]
    k, v = kv[..., :inner], kv[..., inner:]

    def split_heads(t):
        return t.reshape(t.shape[0], t.shape[1], heads, head_dim).transpose(0, 2, 1, 3)

    q, k, v = split_heads(q) * scale, split_heads(k), split_heads(v)
    sim = jnp.einsum("bhid,bhjd->bhij", q, k)

    media_time = jnp.arange(T_img) + 1
    text_time = jnp.cumsum(media_locations.astype(jnp.int32), axis=-1)  # (B, T_txt)
    media_time_rep = jnp.repeat(media_time, n)                          # (T_img*n,)
    mask = text_time[:, None, :, None] == media_time_rep[None, None, None, :]
    sim = jnp.where(mask, sim, NEG_MAX)
    sim = sim - jnp.max(sim, axis=-1, keepdims=True)
    attn = jax.nn.softmax(sim, axis=-1)
    attn = jnp.where((text_time == 0)[:, None, :, None], 0.0, attn)
    out = jnp.einsum("bhij,bhjd->bhid", attn, v)
    out = out.transpose(0, 2, 1, 3).reshape(B, T_txt, inner)
    return out @ params["wout"]


if __name__ == "__main__":
    # Module hyperparameters (small synthetic config).
    dim = 32           # D_txt
    dim_visual = 32    # D_img
    heads = 2
    dim_head = 64
    compress_ratio = 4
    inner = dim_head * heads // compress_ratio   # 32, head_dim = 16

    # Input shapes.
    B, T_txt, T_img, n = 2, 8, 2, 4

    key = jax.random.PRNGKey(0)
    k_x, k_m, k_loc, k_q, k_kv, k_o, k_g, k_b = jax.random.split(key, 8)

    x = jax.random.normal(k_x, (B, T_txt, dim), dtype=jnp.float32)
    media = jax.random.normal(k_m, (B, T_img, n, dim_visual), dtype=jnp.float32)
    media_locations = jax.random.bernoulli(k_loc, 0.3, (B, T_txt))

    params = {
        "ln_gamma": 1.0 + 0.1 * jax.random.normal(k_g, (dim,), dtype=jnp.float32),
        "ln_beta": 0.1 * jax.random.normal(k_b, (dim,), dtype=jnp.float32),
        "wq": 0.05 * jax.random.normal(k_q, (dim, inner), dtype=jnp.float32),
        "wkv": 0.05 * jax.random.normal(k_kv, (dim_visual, 2 * inner), dtype=jnp.float32),
        "wout": 0.05 * jax.random.normal(k_o, (inner, dim), dtype=jnp.float32),
    }

    out = masked_cross_attention(x, media, media_locations, params,
                                 heads=heads, dim_head=dim_head,
                                 compress_ratio=compress_ratio)
    out = jax.block_until_ready(out)

    ref = reference_forward(x, media, media_locations, params,
                            heads=heads, dim_head=dim_head,
                            compress_ratio=compress_ratio)
    ref = jax.block_until_ready(ref)

    assert out.shape == (B, T_txt, dim)
    # bf16 MXU operands (incl. bf16-shipped x) + approx reciprocal in the kernel vs a
    # pure-f32 reference => compare at bf16-appropriate tolerance.
    assert jnp.allclose(out, ref, rtol=2e-2, atol=2e-2), \
        f"max abs err {jnp.max(jnp.abs(out - ref))}"
    print("KERNEL_OK")
</pallas_src>

<mosaic_0001>
module attributes {stable_mosaic.version = 11 : i64} {
  func.func @_masked_xattn_kernel(%arg0: i32, %arg1: memref<2x8x32xbf16, #tpu.memory_space<vmem>>, %arg2: memref<2x8x32xbf16, #tpu.memory_space<vmem>>, %arg3: memref<2x8x1xi32, #tpu.memory_space<vmem>>, %arg4: memref<1x8xi32, #tpu.memory_space<vmem>>, %arg5: memref<1x32xf32, #tpu.memory_space<vmem>>, %arg6: memref<1x32xf32, #tpu.memory_space<vmem>>, %arg7: memref<2x32x16xbf16, #tpu.memory_space<vmem>>, %arg8: memref<2x32x16xbf16, #tpu.memory_space<vmem>>, %arg9: memref<2x32x16xbf16, #tpu.memory_space<vmem>>, %arg10: memref<32x32xbf16, #tpu.memory_space<vmem>>, %arg11: memref<2x8x32xf32, #tpu.memory_space<vmem>>, %arg12: memref<16x32xbf16, #tpu.memory_space<vmem>>) attributes {dimension_semantics = [#tpu.dimension_semantics<parallel>], iteration_bounds = array<i64: 1>, scalar_prefetch = 0 : i64, scratch_operands = 1 : i64, tpu.core_type = #tpu.core_type<tc>, window_params = [{transform_indices = @transform_0, window_bounds = array<i64: 2, 8, 32>}, {transform_indices = @transform_1, window_bounds = array<i64: 2, 8, 32>}, {transform_indices = @transform_2, window_bounds = array<i64: 2, 8, 1>}, {pipeline_mode = #tpu.pipeline_mode<synchronous>, transform_indices = @transform_3, window_bounds = array<i64: 1, 8>}, {pipeline_mode = #tpu.pipeline_mode<synchronous>, transform_indices = @transform_4, window_bounds = array<i64: 1, 32>}, {pipeline_mode = #tpu.pipeline_mode<synchronous>, transform_indices = @transform_5, window_bounds = array<i64: 1, 32>}, {pipeline_mode = #tpu.pipeline_mode<synchronous>, transform_indices = @transform_6, window_bounds = array<i64: 2, 32, 16>}, {pipeline_mode = #tpu.pipeline_mode<synchronous>, transform_indices = @transform_7, window_bounds = array<i64: 2, 32, 16>}, {pipeline_mode = #tpu.pipeline_mode<synchronous>, transform_indices = @transform_8, window_bounds = array<i64: 2, 32, 16>}, {pipeline_mode = #tpu.pipeline_mode<synchronous>, transform_indices = @transform_9, window_bounds = array<i64: 32, 32>}, {transform_indices = @transform_10, window_bounds = array<i64: 2, 8, 32>}]} {
    %c0 = arith.constant 0 : index
    %c0_0 = arith.constant 0 : index
    %c0_1 = arith.constant 0 : index
    %0 = vector.load %arg1[%c0, %c0_0, %c0_1] : memref<2x8x32xbf16, #tpu.memory_space<vmem>>, vector<2x8x32xbf16>
    %1 = arith.extf %0 : vector<2x8x32xbf16> to vector<2x8x32xf32>
    %cst = arith.constant dense<0.000000e+00> : vector<2x8xf32>
    %2 = vector.multi_reduction <add>, %1, %cst [2] : vector<2x8x32xf32> to vector<2x8xf32>
    %3 = vector.shape_cast %2 : vector<2x8xf32> to vector<2x8x1xf32>
    %cst_2 = arith.constant 3.200000e+01 : f32
    %4 = vector.broadcast %cst_2 : f32 to vector<2x8x1xf32>
    %5 = arith.divf %3, %4 : vector<2x8x1xf32>
    %6 = vector.broadcast %5 : vector<2x8x1xf32> to vector<2x8x32xf32>
    %7 = arith.subf %1, %6 : vector<2x8x32xf32>
    %8 = arith.mulf %7, %7 : vector<2x8x32xf32>
    %cst_3 = arith.constant dense<0.000000e+00> : vector<2x8xf32>
    %9 = vector.multi_reduction <add>, %8, %cst_3 [2] : vector<2x8x32xf32> to vector<2x8xf32>
    %10 = vector.shape_cast %9 : vector<2x8xf32> to vector<2x8x1xf32>
    %cst_4 = arith.constant 3.200000e+01 : f32
    %11 = vector.broadcast %cst_4 : f32 to vector<2x8x1xf32>
    %12 = arith.divf %10, %11 : vector<2x8x1xf32>
    %13 = vector.broadcast %5 : vector<2x8x1xf32> to vector<2x8x32xf32>
    %14 = arith.subf %1, %13 : vector<2x8x32xf32>
    %cst_5 = arith.constant 9.99999974E-6 : f32
    %15 = vector.broadcast %cst_5 : f32 to vector<2x8x1xf32>
    %16 = arith.addf %12, %15 : vector<2x8x1xf32>
    %17 = math.rsqrt %16 : vector<2x8x1xf32>
    %18 = vector.broadcast %17 : vector<2x8x1xf32> to vector<2x8x32xf32>
    %19 = arith.mulf %14, %18 : vector<2x8x32xf32>
    %c0_6 = arith.constant 0 : index
    %c0_7 = arith.constant 0 : index
    %20 = vector.load %arg5[%c0_6, %c0_7] : memref<1x32xf32, #tpu.memory_space<vmem>>, vector<1x32xf32>
    %21 = vector.shape_cast %20 : vector<1x32xf32> to vector<1x1x32xf32>
    %22 = vector.broadcast %21 : vector<1x1x32xf32> to vector<2x8x32xf32>
    %23 = arith.mulf %19, %22 : vector<2x8x32xf32>
    %c0_8 = arith.constant 0 : index
    %c0_9 = arith.constant 0 : index
    %24 = vector.load %arg6[%c0_8, %c0_9] : memref<1x32xf32, #tpu.memory_space<vmem>>, vector<1x32xf32>
    %25 = vector.shape_cast %24 : vector<1x32xf32> to vector<1x1x32xf32>
    %26 = vector.broadcast %25 : vector<1x1x32xf32> to vector<2x8x32xf32>
    %27 = arith.addf %23, %26 : vector<2x8x32xf32>
    %28 = arith.truncf %27 : vector<2x8x32xf32> to vector<2x8x32xbf16>
    %29 = vector.shape_cast %28 : vector<2x8x32xbf16> to vector<16x32xbf16>
    %30 = vector.shape_cast %29 : vector<16x32xbf16> to vector<1x16x32xbf16>
    %31 = vector.shape_cast %30 : vector<1x16x32xbf16> to vector<1x16x32xbf16>
    %32 = vector.broadcast %31 : vector<1x16x32xbf16> to vector<2x16x32xbf16>
    %c0_10 = arith.constant 0 : index
    %c0_11 = arith.constant 0 : index
    %c0_12 = arith.constant 0 : index
    %33 = vector.load %arg2[%c0_10, %c0_11, %c0_12] : memref<2x8x32xbf16, #tpu.memory_space<vmem>>, vector<2x8x32xbf16>
    %34 = vector.shape_cast %33 : vector<2x8x32xbf16> to vector<16x32xbf16>
    %35 = vector.shape_cast %34 : vector<16x32xbf16> to vector<1x16x32xbf16>
    %36 = vector.shape_cast %35 : vector<1x16x32xbf16> to vector<1x16x32xbf16>
    %37 = vector.broadcast %36 : vector<1x16x32xbf16> to vector<2x16x32xbf16>
    %c0_13 = arith.constant 0 : index
    %c0_14 = arith.constant 0 : index
    %c0_15 = arith.constant 0 : index
    %38 = vector.load %arg7[%c0_13, %c0_14, %c0_15] : memref<2x32x16xbf16, #tpu.memory_space<vmem>>, vector<2x32x16xbf16>
    "tpu.trace_start"() <{level = 10 : i32, message = "hrd,hdk->hrk"}> : () -> ()
    %cst_16 = arith.constant dense<0.000000e+00> : vector<2x16x16xf32>
    %39 = tpu.matmul %32, %38, %cst_16 {dimension_numbers = #tpu.dot_dimension_numbers<[2], [1], [1], [2], [0, 0, 0, 1, 1, 2], [0], [0]>} : vector<2x16x32xbf16>, vector<2x32x16xbf16>, vector<2x16x16xf32> -> vector<2x16x16xf32>
    "tpu.trace_stop"() : () -> ()
    %c0_17 = arith.constant 0 : index
    %c0_18 = arith.constant 0 : index
    %c0_19 = arith.constant 0 : index
    %40 = vector.load %arg8[%c0_17, %c0_18, %c0_19] : memref<2x32x16xbf16, #tpu.memory_space<vmem>>, vector<2x32x16xbf16>
    "tpu.trace_start"() <{level = 10 : i32, message = "hrd,hdk->hrk"}> : () -> ()
    %cst_20 = arith.constant dense<0.000000e+00> : vector<2x16x16xf32>
    %41 = tpu.matmul %37, %40, %cst_20 {dimension_numbers = #tpu.dot_dimension_numbers<[2], [1], [1], [2], [0, 0, 0, 1, 1, 2], [0], [0]>} : vector<2x16x32xbf16>, vector<2x32x16xbf16>, vector<2x16x16xf32> -> vector<2x16x16xf32>
    "tpu.trace_stop"() : () -> ()
    %c0_21 = arith.constant 0 : index
    %c0_22 = arith.constant 0 : index
    %c0_23 = arith.constant 0 : index
    %42 = vector.load %arg9[%c0_21, %c0_22, %c0_23] : memref<2x32x16xbf16, #tpu.memory_space<vmem>>, vector<2x32x16xbf16>
    "tpu.trace_start"() <{level = 10 : i32, message = "hrd,hdk->hrk"}> : () -> ()
    %cst_24 = arith.constant dense<0.000000e+00> : vector<2x16x16xf32>
    %43 = tpu.matmul %37, %42, %cst_24 {dimension_numbers = #tpu.dot_dimension_numbers<[2], [1], [1], [2], [0, 0, 0, 1, 1, 2], [0], [0]>} : vector<2x16x32xbf16>, vector<2x32x16xbf16>, vector<2x16x16xf32> -> vector<2x16x16xf32>
    "tpu.trace_stop"() : () -> ()
    %44 = arith.truncf %39 : vector<2x16x16xf32> to vector<2x16x16xbf16>
    %45 = vector.shape_cast %44 : vector<2x16x16xbf16> to vector<4x8x16xbf16>
    %46 = arith.truncf %41 : vector<2x16x16xf32> to vector<2x16x16xbf16>
    %47 = vector.shape_cast %46 : vector<2x16x16xbf16> to vector<4x8x16xbf16>
    %48 = arith.truncf %43 : vector<2x16x16xf32> to vector<2x16x16xbf16>
    %49 = vector.shape_cast %48 : vector<2x16x16xbf16> to vector<4x8x16xbf16>
    "tpu.trace_start"() <{level = 10 : i32, message = "gik,gjk->gij"}> : () -> ()
    %cst_25 = arith.constant dense<0.000000e+00> : vector<4x8x8xf32>
    %50 = tpu.matmul %45, %47, %cst_25 {dimension_numbers = #tpu.dot_dimension_numbers<[2], [2], [1], [1], [0, 0, 0, 1, 1, 1], [0], [0]>} : vector<4x8x16xbf16>, vector<4x8x16xbf16>, vector<4x8x8xf32> -> vector<4x8x8xf32>
    "tpu.trace_stop"() : () -> ()
    %c0_26 = arith.constant 0 : index
    %c0_27 = arith.constant 0 : index
    %c0_28 = arith.constant 0 : index
    %51 = vector.load %arg3[%c0_26, %c0_27, %c0_28] : memref<2x8x1xi32, #tpu.memory_space<vmem>>, vector<2x8x1xi32>
    %c0_29 = arith.constant 0 : index
    %c0_30 = arith.constant 0 : index
    %52 = vector.load %arg4[%c0_29, %c0_30] : memref<1x8xi32, #tpu.memory_space<vmem>>, vector<1x8xi32>
    %53 = vector.shape_cast %52 : vector<1x8xi32> to vector<1x1x8xi32>
    %54 = vector.broadcast %51 : vector<2x8x1xi32> to vector<2x8x8xi32>
    %55 = vector.broadcast %53 : vector<1x1x8xi32> to vector<2x8x8xi32>
    %56 = arith.cmpi eq, %54, %55 : vector<2x8x8xi32>
    %57 = tpu.concatenate %56, %56 in 0 : vector<2x8x8xi1>, vector<2x8x8xi1> -> vector<4x8x8xi1>
    %cst_31 = arith.constant -3.40282347E+38 : f32
    %58 = vector.broadcast %cst_31 : f32 to vector<4x8x8xf32>
    %59 = arith.select %57, %50, %58 : vector<4x8x8xi1>, vector<4x8x8xf32>
    %cst_32 = arith.constant dense<0xFF800000> : vector<4x8xf32>
    %60 = vector.multi_reduction <maximumf>, %59, %cst_32 [2] : vector<4x8x8xf32> to vector<4x8xf32>
    %61 = vector.shape_cast %60 : vector<4x8xf32> to vector<4x8x1xf32>
    %62 = vector.broadcast %61 : vector<4x8x1xf32> to vector<4x8x8xf32>
    %63 = arith.subf %59, %62 : vector<4x8x8xf32>
    %64 = math.exp %63 : vector<4x8x8xf32>
    %cst_33 = arith.constant dense<0.000000e+00> : vector<4x8xf32>
    %65 = vector.multi_reduction <add>, %64, %cst_33 [2] : vector<4x8x8xf32> to vector<4x8xf32>
    %66 = vector.shape_cast %65 : vector<4x8xf32> to vector<4x8x1xf32>
    %67 = tpu.reciprocal %66 {approx = true} : vector<4x8x1xf32> -> vector<4x8x1xf32>
    %68 = vector.broadcast %67 : vector<4x8x1xf32> to vector<4x8x8xf32>
    %69 = arith.mulf %64, %68 : vector<4x8x8xf32>
    %70 = arith.truncf %69 : vector<4x8x8xf32> to vector<4x8x8xbf16>
    "tpu.trace_start"() <{level = 10 : i32, message = "gij,gjk->gik"}> : () -> ()
    %cst_34 = arith.constant dense<0.000000e+00> : vector<4x8x16xf32>
    %71 = tpu.matmul %70, %49, %cst_34 {dimension_numbers = #tpu.dot_dimension_numbers<[2], [1], [1], [2], [0, 0, 0, 1, 1, 2], [0], [0]>} : vector<4x8x8xbf16>, vector<4x8x16xbf16>, vector<4x8x16xf32> -> vector<4x8x16xf32>
    "tpu.trace_stop"() : () -> ()
    %72 = vector.extract_strided_slice %71 {offsets = [0, 0, 0], sizes = [2, 8, 16], strides = [1, 1, 1]} : vector<4x8x16xf32> to vector<2x8x16xf32>
    %73 = vector.shape_cast %72 : vector<2x8x16xf32> to vector<16x16xf32>
    %74 = arith.truncf %73 : vector<16x16xf32> to vector<16x16xbf16>
    %c0_35 = arith.constant 0 : index
    %c0_36 = arith.constant 0 : index
    %75 = vector.load %arg12[%c0_35, %c0_36] : memref<16x32xbf16, #tpu.memory_space<vmem>>, vector<16x16xbf16>
    tpu.vector_store %arg12[%c0_35, %c0_36], %74 {strides = array<i32>} : memref<16x32xbf16, #tpu.memory_space<vmem>>, vector<16x16xbf16>,
    %76 = vector.extract_strided_slice %71 {offsets = [2, 0, 0], sizes = [2, 8, 16], strides = [1, 1, 1]} : vector<4x8x16xf32> to vector<2x8x16xf32>
    %77 = vector.shape_cast %76 : vector<2x8x16xf32> to vector<16x16xf32>
    %78 = arith.truncf %77 : vector<16x16xf32> to vector<16x16xbf16>
    %c0_37 = arith.constant 0 : index
    %c16 = arith.constant 16 : index
    %79 = vector.load %arg12[%c0_37, %c16] : memref<16x32xbf16, #tpu.memory_space<vmem>>, vector<16x16xbf16>
    tpu.vector_store %arg12[%c0_37, %c16], %78 {strides = array<i32>} : memref<16x32xbf16, #tpu.memory_space<vmem>>, vector<16x16xbf16>,
    %c0_38 = arith.constant 0 : index
    %c0_39 = arith.constant 0 : index
    %80 = vector.load %arg12[%c0_38, %c0_39] : memref<16x32xbf16, #tpu.memory_space<vmem>>, vector<16x32xbf16>
    %c0_40 = arith.constant 0 : index
    %c0_41 = arith.constant 0 : index
    %81 = vector.load %arg10[%c0_40, %c0_41] : memref<32x32xbf16, #tpu.memory_space<vmem>>, vector<32x32xbf16>
    %cst_42 = arith.constant dense<0.000000e+00> : vector<16x32xf32>
    %82 = tpu.matmul %80, %81, %cst_42 {dimension_numbers = #tpu.dot_dimension_numbers<[1], [0], [0], [1], [0, 0, 1, 1], [], []>} : vector<16x32xbf16>, vector<32x32xbf16>, vector<16x32xf32> -> vector<16x32xf32>
    %83 = vector.shape_cast %82 : vector<16x32xf32> to vector<2x8x32xf32>
    %c0_i32 = arith.constant 0 : i32
    %84 = vector.broadcast %c0_i32 : i32 to vector<2x8x1xi32>
    %85 = arith.cmpi eq, %51, %84 : vector<2x8x1xi32>
    %cst_43 = arith.constant 0.000000e+00 : f32
    %86 = vector.shape_cast %85 : vector<2x8x1xi1> to vector<2x8x1xi1>
    %87 = vector.broadcast %86 : vector<2x8x1xi1> to vector<2x8x32xi1>
    %88 = vector.broadcast %cst_43 : f32 to vector<2x8x32xf32>
    %89 = arith.select %87, %88, %83 : vector<2x8x32xi1>, vector<2x8x32xf32>
    %c0_44 = arith.constant 0 : index
    %c0_45 = arith.constant 0 : index
    %c0_46 = arith.constant 0 : index
    %90 = vector.load %arg11[%c0_44, %c0_45, %c0_46] : memref<2x8x32xf32, #tpu.memory_space<vmem>>, vector<2x8x32xf32>
    tpu.vector_store %arg11[%c0_44, %c0_45, %c0_46], %89 {strides = array<i32>} : memref<2x8x32xf32, #tpu.memory_space<vmem>>, vector<2x8x32xf32>,
    return
  }
  func.func @transform_0(%arg0: i32) -> (i32, i32, i32) {
    %c0_i32 = arith.constant 0 : i32
    %c0_i32_0 = arith.constant 0 : i32
    %c0_i32_1 = arith.constant 0 : i32
    return %arg0, %c0_i32, %c0_i32_0 : i32, i32, i32
  }
  func.func @transform_1(%arg0: i32) -> (i32, i32, i32) {
    %c0_i32 = arith.constant 0 : i32
    %c0_i32_0 = arith.constant 0 : i32
    %c0_i32_1 = arith.constant 0 : i32
    return %arg0, %c0_i32, %c0_i32_0 : i32, i32, i32
  }
  func.func @transform_2(%arg0: i32) -> (i32, i32, i32) {
    %c0_i32 = arith.constant 0 : i32
    %c0_i32_0 = arith.constant 0 : i32
    %c0_i32_1 = arith.constant 0 : i32
    return %arg0, %c0_i32, %c0_i32_0 : i32, i32, i32
  }
  func.func @transform_3(%arg0: i32) -> (i32, i32) {
    %c0_i32 = arith.constant 0 : i32
    %c0_i32_0 = arith.constant 0 : i32
    %c0_i32_1 = arith.constant 0 : i32
    return %c0_i32, %c0_i32_0 : i32, i32
  }
  func.func @transform_4(%arg0: i32) -> (i32, i32) {
    %c0_i32 = arith.constant 0 : i32
    %c0_i32_0 = arith.constant 0 : i32
    %c0_i32_1 = arith.constant 0 : i32
    return %c0_i32, %c0_i32_0 : i32, i32
  }
  func.func @transform_5(%arg0: i32) -> (i32, i32) {
    %c0_i32 = arith.constant 0 : i32
    %c0_i32_0 = arith.constant 0 : i32
    %c0_i32_1 = arith.constant 0 : i32
    return %c0_i32, %c0_i32_0 : i32, i32
  }
  func.func @transform_6(%arg0: i32) -> (i32, i32, i32) {
    %c0_i32 = arith.constant 0 : i32
    %c0_i32_0 = arith.constant 0 : i32
    %c0_i32_1 = arith.constant 0 : i32
    %c0_i32_2 = arith.constant 0 : i32
    return %c0_i32, %c0_i32_0, %c0_i32_1 : i32, i32, i32
  }
  func.func @transform_7(%arg0: i32) -> (i32, i32, i32) {
    %c0_i32 = arith.constant 0 : i32
    %c0_i32_0 = arith.constant 0 : i32
    %c0_i32_1 = arith.constant 0 : i32
    %c0_i32_2 = arith.constant 0 : i32
    return %c0_i32, %c0_i32_0, %c0_i32_1 : i32, i32, i32
  }
  func.func @transform_8(%arg0: i32) -> (i32, i32, i32) {
    %c0_i32 = arith.constant 0 : i32
    %c0_i32_0 = arith.constant 0 : i32
    %c0_i32_1 = arith.constant 0 : i32
    %c0_i32_2 = arith.constant 0 : i32
    return %c0_i32, %c0_i32_0, %c0_i32_1 : i32, i32, i32
  }
  func.func @transform_9(%arg0: i32) -> (i32, i32) {
    %c0_i32 = arith.constant 0 : i32
    %c0_i32_0 = arith.constant 0 : i32
    %c0_i32_1 = arith.constant 0 : i32
    return %c0_i32, %c0_i32_0 : i32, i32
  }
  func.func @transform_10(%arg0: i32) -> (i32, i32, i32) {
    %c0_i32 = arith.constant 0 : i32
    %c0_i32_0 = arith.constant 0 : i32
    %c0_i32_1 = arith.constant 0 : i32
    return %arg0, %c0_i32, %c0_i32_0 : i32, i32, i32
  }
}

</mosaic_0001>

<llo_original>
// kernel: tpu_custom_call.1
$region0: #{tpu_custom_call.1}
  #allocation0 [shape = 'u32[]', space=smem, size = 0x4, offset = 0x4, fixed_abs, tag = 'smem constant byte address 0x4 - core index']
  #allocation1 [shape = 'u32[144,128]{1,0:T(1,128)}', space=vmem, size = 0x12000, scoped, tag = 'internal scratch']
  #allocation2 [shape = 'bf16[16,32]{1,0:T(8,128)(2,1)}', space=vmem, size = 0x1000, scoped, tag = 'scratch operand']
  %s0 = inlined_call_operand.vmem [shape: bf16[2,8,32], index: 0, kind: input, shape index: {}]
  %s1 = inlined_call_operand.vmem [shape: bf16[2,8,32], index: 1, kind: input, shape index: {}]
  %s2 = inlined_call_operand.vmem [shape: s32[2,8,1], index: 2, kind: input, shape index: {}]
  %s3 = inlined_call_operand.vmem [shape: s32[1,8], index: 3, kind: input, shape index: {}]
  %s4 = inlined_call_operand.vmem [shape: f32[1,32], index: 4, kind: input, shape index: {}]
  %s5 = inlined_call_operand.vmem [shape: f32[1,32], index: 5, kind: input, shape index: {}]
  %s6 = inlined_call_operand.vmem [shape: bf16[2,32,16], index: 6, kind: input, shape index: {}]
  %s7 = inlined_call_operand.vmem [shape: bf16[2,32,16], index: 7, kind: input, shape index: {}]
  %s8 = inlined_call_operand.vmem [shape: bf16[2,32,16], index: 8, kind: input, shape index: {}]
  %s9 = inlined_call_operand.vmem [shape: bf16[32,32], index: 9, kind: input, shape index: {}]
  %s10 = inlined_call_operand.hbm [shape: f32[2,8,32], index: 10, kind: output, shape index: {}]
  %s11 = sld [smem:[#allocation0]]
  $region50: #{tpu_custom_call.1} parent=0
    _
  %s13 = ssub.s32 1, %s11
  %s14 = scalar_select 0, %s13, %s11
  $region1: #{tpu_custom_call.1} parent=0
    #allocation3 [shape = 'u8[8192]{0}', space=vmem, size = 0x2000, scoped, tag = 'output window, operand 0, single buffered']
    #allocation4 [shape = 's32[1]{0}', space=sflag, size = 0x4, scoped, tag = 'scoped memory for tpu_custom_call.1']
    %15 = vsyncpa [#allocation4], 0
    // Predicated region
    $region2: #{tpu_custom_call.1} parent=1 // pred_check
      _
    $region3: #{tpu_custom_call.1} parent=1 // pred_check_branch
      %17 = sbr.rel (0) target = $region5
    $region4: #{tpu_custom_call.1} parent=1 // pred_region
      _
    $region5: #{tpu_custom_call.1} parent=1 // pred_fallthru
      _
    // Predicated region
    $region6: #{tpu_custom_call.1} parent=1 // pred_check
      _
    $region7: #{tpu_custom_call.1} parent=1 // pred_check_branch
      %19 = sbr.rel (0) target = $region9
    $region8: #{tpu_custom_call.1} parent=1 // pred_region
      _
    $region9: #{tpu_custom_call.1} parent=1 // pred_fallthru
      _
    // Predicated region
    $region10: #{tpu_custom_call.1} parent=1 // pred_check
      _
    $region11: #{tpu_custom_call.1} parent=1 // pred_check_branch
      %21 = sbr.rel (0) target = $region13
    $region12: #{tpu_custom_call.1} parent=1 // pred_region
      _
    $region13: #{tpu_custom_call.1} parent=1 // pred_fallthru
      _
    // Predicated region
    $region14: #{tpu_custom_call.1} parent=1 // pred_check
      _
    $region15: #{tpu_custom_call.1} parent=1 // pred_check_branch
      %23 = sbr.rel (0) target = $region17
    $region16: #{tpu_custom_call.1} parent=1 // pred_region
      _
    $region17: #{tpu_custom_call.1} parent=1 // pred_fallthru
      _
    // Predicated region
    $region18: #{tpu_custom_call.1} parent=1 // pred_check
      _
    $region19: #{tpu_custom_call.1} parent=1 // pred_check_branch
      %25 = sbr.rel (0) target = $region21
    $region20: #{tpu_custom_call.1} parent=1 // pred_region
      _
    $region21: #{tpu_custom_call.1} parent=1 // pred_fallthru
      _
    // Predicated region
    $region22: #{tpu_custom_call.1} parent=1 // pred_check
      _
    $region23: #{tpu_custom_call.1} parent=1 // pred_check_branch
      %27 = sbr.rel (0) target = $region25
    $region24: #{tpu_custom_call.1} parent=1 // pred_region
      _
    $region25: #{tpu_custom_call.1} parent=1 // pred_fallthru
      _
    // Predicated region
    $region26: #{tpu_custom_call.1} parent=1 // pred_check
      _
    $region27: #{tpu_custom_call.1} parent=1 // pred_check_branch
      %29 = sbr.rel (0) target = $region29
    $region28: #{tpu_custom_call.1} parent=1 // pred_region
      _
    $region29: #{tpu_custom_call.1} parent=1 // pred_fallthru
      _
    // Predicated region
    $region30: #{tpu_custom_call.1} parent=1 // pred_check
      _
    $region31: #{tpu_custom_call.1} parent=1 // pred_check_branch
      %31 = sbr.rel (0) target = $region33
    $region32: #{tpu_custom_call.1} parent=1 // pred_region
      _
    $region33: #{tpu_custom_call.1} parent=1 // pred_fallthru
      _
    // Predicated region
    $region34: #{tpu_custom_call.1} parent=1 // pred_check
      _
    $region35: #{tpu_custom_call.1} parent=1 // pred_check_branch
      %33 = sbr.rel (0) target = $region37
    $region36: #{tpu_custom_call.1} parent=1 // pred_region
      _
    $region37: #{tpu_custom_call.1} parent=1 // pred_fallthru
      _
    // Predicated region
    $region38: #{tpu_custom_call.1} parent=1 // pred_check
      _
    $region39: #{tpu_custom_call.1} parent=1 // pred_check_branch
      %35 = sbr.rel (0) target = $region41
    $region40: #{tpu_custom_call.1} parent=1 // pred_region
      _
    $region41: #{tpu_custom_call.1} parent=1 // pred_fallthru
      _
    %v37 = vld [vmem:[%s0] sm:$0xf]
    %v38 = vld [vmem:[%s0 + $0x4] sm:$0xf]
    %v39 = vunpack.c.l.bf16 %v37
    %v40 = vunpack.c.l.bf16 %v38
    %vm41 = vcmask 261120
    %v42 = vsel %vm41, %v39, 0.0
    %43 = vadd.xlane.f32.xlu0 %v42
    %v44 = vpop.xlane.xlu0 %43
    %v45 = vsel %vm41, %v40, 0.0
    %46 = vadd.xlane.f32.xlu0 %v45
    %v47 = vpop.xlane.xlu0 %46
    %v48 = vrcp.pop 32.0
    %v49 = vmul.f32 %v44, %v48
    %v50 = vmul.f32 %v47, %v48
    %v51 = vsub.f32 %v39, %v49
    %v52 = vsub.f32 %v40, %v50
    %v53 = vmul.f32 %v51, %v51
    %v54 = vmul.f32 %v52, %v52
    %v55 = vsel %vm41, %v53, 0.0
    %56 = vadd.xlane.f32.xlu0 %v55
    %v57 = vpop.xlane.xlu0 %56
    %v58 = vsel %vm41, %v54, 0.0
    %59 = vadd.xlane.f32.xlu0 %v58
    %v60 = vpop.xlane.xlu0 %59
    %v61 = vmul.f32 %v57, %v48
    %v62 = vmul.f32 %v60, %v48
    %v63 = vadd.f32 %v61, 1e-05
    %v64 = vadd.f32 %v62, 1e-05
    %v65 = vrsqrt.pop %v63
    %v66 = vrsqrt.pop %v64
    %v67 = vmul.f32 %v51, %v65
    %v68 = vmul.f32 %v52, %v66
    %v69 = vld [vmem:[%s4] sm:$0x1]
    %v71 = vlaneseq
    %v72 = vshrl.u32 %v71, 7
    %v73 = vsub.s32 0, %v72
    %v74 = vrot.slane %v69, %v73
    %v76 = vmul.f32 %v67, %v74
    %v77 = vmul.f32 %v68, %v74
    %v78 = vld [vmem:[%s5] sm:$0x1]
    %v80 = vlaneseq
    %v81 = vshrl.u32 %v80, 7
    %v82 = vsub.s32 0, %v81
    %v83 = vrot.slane %v78, %v82
    %v85 = vadd.f32 %v76, %v83
    %v86 = vadd.f32 %v77, %v83
    %v87 = vpack.c.bf16 %v85, %v85
    %v88 = vpack.c.bf16 %v86, %v86
    %v89 = vld [vmem:[%s1] sm:$0xf]
    %v90 = vld [vmem:[%s1 + $0x4] sm:$0xf]
    %v91 = vld [vmem:[%s6] sm:$0xf]
    %v92 = vld [vmem:[%s6 + $0x4] sm:$0xf]
    %v93 = vld [vmem:[%s6 + $0x8] sm:$0xf]
    %v94 = vld [vmem:[%s6 + $0xc] sm:$0xf]
    %v95 = vld [vmem:[%s6 + $0x10] sm:$0xf]
    %v96 = vld [vmem:[%s6 + $0x14] sm:$0xf]
    %v97 = vld [vmem:[%s6 + $0x18] sm:$0xf]
    %v98 = vld [vmem:[%s6 + $0x1c] sm:$0xf]
    %v101 = vunpack.c.l.b16 %v87
    %v102 = vunpack.c.l.b16 %v88
    %v103 = vpack.c.b16 %v102, %v101
    %v108 = vunpack.c.l.b16 %v91
    %v109 = vunpack.c.l.b16 %v92
    %v110 = vunpack.c.l.b16 %v93
    %v111 = vunpack.c.l.b16 %v94
    %v112 = vpack.c.b16 %v109, %v108
    %v113 = vpack.c.b16 %v111, %v110
    %v117 = vsel %vm41, %v103, 0
    %119 = vmatprep.subr.bf16.mxu0 0
    %120 = vmatpush1.bf16.msra.mxu0 0
    %121 = vmatprep.subr.bf16.mxu0 0
    %122 = vmatpush1.bf16.msra.mxu0 0
    %123 = vmatprep.subr.bf16.mxu0 0
    %124 = vmatpush1.bf16.msra.mxu0 0
    %125 = vmatprep.subr.bf16.mxu0 0
    %126 = vmatpush1.bf16.msra.mxu0 0
    %127 = vmatprep.subr.bf16.mxu0 0
    %128 = vmatpush1.bf16.msra.mxu0 0
    %129 = vmatprep.subr.bf16.mxu0 0
    %130 = vmatpush1.bf16.msra.mxu0 0
    %131 = vmatprep.subr.bf16.mxu0 0
    %132 = vmatpush1.bf16.msra.mxu0 %v113
    %133 = vmatprep.subr.bf16.mxu0 0
    %134 = vmatpush1.bf16.msra.mxu0 %v112
    %135 = vmatprep.subr.bf16.mxu0 0
    %136 = vmatpush2.bf16.msra.mxu0 0
    %137 = vmatprep.subr.bf16.mxu0 0
    %138 = vmatpush2.bf16.msra.mxu0 0
    %139 = vmatprep.subr.bf16.mxu0 0
    %140 = vmatpush2.bf16.msra.mxu0 0
    %141 = vmatprep.subr.bf16.mxu0 0
    %142 = vmatpush2.bf16.msra.mxu0 0
    %143 = vmatprep.subr.bf16.mxu0 0
    %144 = vmatpush2.bf16.msra.mxu0 0
    %145 = vmatprep.subr.bf16.mxu0 0
    %146 = vmatpush2.bf16.msra.mxu0 0
    %147 = vmatprep.subr.bf16.mxu0 0
    %148 = vmatpush2.bf16.msra.mxu0 0
    %149 = vmatprep.subr.bf16.mxu0 0
    %150 = vmatpush2.bf16.msra.mxu0 0
    %151 = vmatprep.mubr.bf16.mxu0 0
    %152 = vmatmul.mubr.bf16.gmra.mxu0 %v117
    %v153 = vpop.f32.mrf.mxu0
    %v154 = vadd.f32 0.0, %v153
    %v155 = vpop.f32.mrf.mxu0
    %v156 = vpop.f32.mrf.mxu0
    %v157 = vadd.f32 0.0, %v156
    %v158 = vpop.f32.mrf.mxu0
    %159 = vdwg.mxu0
    %v164 = vunpack.c.l.b16 %v95
    %v165 = vunpack.c.l.b16 %v96
    %v166 = vunpack.c.l.b16 %v97
    %v167 = vunpack.c.l.b16 %v98
    %v168 = vpack.c.b16 %v165, %v164
    %v169 = vpack.c.b16 %v167, %v166
    %172 = vmatprep.subr.bf16.mxu0 0
    %173 = vmatpush1.bf16.msra.mxu0 0
    %174 = vmatprep.subr.bf16.mxu0 0
    %175 = vmatpush1.bf16.msra.mxu0 0
    %176 = vmatprep.subr.bf16.mxu0 0
    %177 = vmatpush1.bf16.msra.mxu0 0
    %178 = vmatprep.subr.bf16.mxu0 0
    %179 = vmatpush1.bf16.msra.mxu0 0
    %180 = vmatprep.subr.bf16.mxu0 0
    %181 = vmatpush1.bf16.msra.mxu0 0
    %182 = vmatprep.subr.bf16.mxu0 0
    %183 = vmatpush1.bf16.msra.mxu0 0
    %184 = vmatprep.subr.bf16.mxu0 0
    %185 = vmatpush1.bf16.msra.mxu0 %v169
    %186 = vmatprep.subr.bf16.mxu0 0
    %187 = vmatpush1.bf16.msra.mxu0 %v168
    %188 = vmatprep.subr.bf16.mxu0 0
    %189 = vmatpush2.bf16.msra.mxu0 0
    %190 = vmatprep.subr.bf16.mxu0 0
    %191 = vmatpush2.bf16.msra.mxu0 0
    %192 = vmatprep.subr.bf16.mxu0 0
    %193 = vmatpush2.bf16.msra.mxu0 0
    %194 = vmatprep.subr.bf16.mxu0 0
    %195 = vmatpush2.bf16.msra.mxu0 0
    %196 = vmatprep.subr.bf16.mxu0 0
    %197 = vmatpush2.bf16.msra.mxu0 0
    %198 = vmatprep.subr.bf16.mxu0 0
    %199 = vmatpush2.bf16.msra.mxu0 0
    %200 = vmatprep.subr.bf16.mxu0 0
    %201 = vmatpush2.bf16.msra.mxu0 0
    %202 = vmatprep.subr.bf16.mxu0 0
    %203 = vmatpush2.bf16.msra.mxu0 0
    %204 = vmatprep.mubr.bf16.mxu0 0
    %205 = vmatmul.mubr.bf16.gmra.mxu0 %v117
    %v206 = vpop.f32.mrf.mxu0
    %v207 = vadd.f32 0.0, %v206
    %v208 = vpop.f32.mrf.mxu0
    %v209 = vpop.f32.mrf.mxu0
    %v210 = vadd.f32 0.0, %v209
    %v211 = vpop.f32.mrf.mxu0
    %212 = vdwg.mxu0
    %v213 = vld [vmem:[%s7] sm:$0xf]
    %v214 = vld [vmem:[%s7 + $0x4] sm:$0xf]
    %v215 = vld [vmem:[%s7 + $0x8] sm:$0xf]
    %v216 = vld [vmem:[%s7 + $0xc] sm:$0xf]
    %v217 = vld [vmem:[%s7 + $0x10] sm:$0xf]
    %v218 = vld [vmem:[%s7 + $0x14] sm:$0xf]
    %v219 = vld [vmem:[%s7 + $0x18] sm:$0xf]
    %v220 = vld [vmem:[%s7 + $0x1c] sm:$0xf]
    %v223 = vunpack.c.l.b16 %v89
    %v224 = vunpack.c.l.b16 %v90
    %v225 = vpack.c.b16 %v224, %v223
    %v230 = vunpack.c.l.b16 %v213
    %v231 = vunpack.c.l.b16 %v214
    %v232 = vunpack.c.l.b16 %v215
    %v233 = vunpack.c.l.b16 %v216
    %v234 = vpack.c.b16 %v231, %v230
    %v235 = vpack.c.b16 %v233, %v232
    %v239 = vsel %vm41, %v225, 0
    %241 = vmatprep.subr.bf16.mxu0 0
    %242 = vmatpush1.bf16.msra.mxu0 0
    %243 = vmatprep.subr.bf16.mxu0 0
    %244 = vmatpush1.bf16.msra.mxu0 0
    %245 = vmatprep.subr.bf16.mxu0 0
    %246 = vmatpush1.bf16.msra.mxu0 0
    %247 = vmatprep.subr.bf16.mxu0 0
    %248 = vmatpush1.bf16.msra.mxu0 0
    %249 = vmatprep.subr.bf16.mxu0 0
    %250 = vmatpush1.bf16.msra.mxu0 0
    %251 = vmatprep.subr.bf16.mxu0 0
    %252 = vmatpush1.bf16.msra.mxu0 0
    %253 = vmatprep.subr.bf16.mxu0 0
    %254 = vmatpush1.bf16.msra.mxu0 %v235
    %255 = vmatprep.subr.bf16.mxu0 0
    %256 = vmatpush1.bf16.msra.mxu0 %v234
    %257 = vmatprep.subr.bf16.mxu0 0
    %258 = vmatpush2.bf16.msra.mxu0 0
    %259 = vmatprep.subr.bf16.mxu0 0
    %260 = vmatpush2.bf16.msra.mxu0 0
    %261 = vmatprep.subr.bf16.mxu0 0
    %262 = vmatpush2.bf16.msra.mxu0 0
    %263 = vmatprep.subr.bf16.mxu0 0
    %264 = vmatpush2.bf16.msra.mxu0 0
    %265 = vmatprep.subr.bf16.mxu0 0
    %266 = vmatpush2.bf16.msra.mxu0 0
    %267 = vmatprep.subr.bf16.mxu0 0
    %268 = vmatpush2.bf16.msra.mxu0 0
    %269 = vmatprep.subr.bf16.mxu0 0
    %270 = vmatpush2.bf16.msra.mxu0 0
    %271 = vmatprep.subr.bf16.mxu0 0
    %272 = vmatpush2.bf16.msra.mxu0 0
    %273 = vmatprep.mubr.bf16.mxu0 0
    %274 = vmatmul.mubr.bf16.gmra.mxu0 %v239
    %v275 = vpop.f32.mrf.mxu0
    %v276 = vadd.f32 0.0, %v275
    %v277 = vpop.f32.mrf.mxu0
    %v278 = vpop.f32.mrf.mxu0
    %v279 = vadd.f32 0.0, %v278
    %v280 = vpop.f32.mrf.mxu0
    %281 = vdwg.mxu0
    %v286 = vunpack.c.l.b16 %v217
    %v287 = vunpack.c.l.b16 %v218
    %v288 = vunpack.c.l.b16 %v219
    %v289 = vunpack.c.l.b16 %v220
    %v290 = vpack.c.b16 %v287, %v286
    %v291 = vpack.c.b16 %v289, %v288
    %294 = vmatprep.subr.bf16.mxu0 0
    %295 = vmatpush1.bf16.msra.mxu0 0
    %296 = vmatprep.subr.bf16.mxu0 0
    %297 = vmatpush1.bf16.msra.mxu0 0
    %298 = vmatprep.subr.bf16.mxu0 0
    %299 = vmatpush1.bf16.msra.mxu0 0
    %300 = vmatprep.subr.bf16.mxu0 0
    %301 = vmatpush1.bf16.msra.mxu0 0
    %302 = vmatprep.subr.bf16.mxu0 0
    %303 = vmatpush1.bf16.msra.mxu0 0
    %304 = vmatprep.subr.bf16.mxu0 0
    %305 = vmatpush1.bf16.msra.mxu0 0
    %306 = vmatprep.subr.bf16.mxu0 0
    %307 = vmatpush1.bf16.msra.mxu0 %v291
    %308 = vmatprep.subr.bf16.mxu0 0
    %309 = vmatpush1.bf16.msra.mxu0 %v290
    %310 = vmatprep.subr.bf16.mxu0 0
    %311 = vmatpush2.bf16.msra.mxu0 0
    %312 = vmatprep.subr.bf16.mxu0 0
    %313 = vmatpush2.bf16.msra.mxu0 0
    %314 = vmatprep.subr.bf16.mxu0 0
    %315 = vmatpush2.bf16.msra.mxu0 0
    %316 = vmatprep.subr.bf16.mxu0 0
    %317 = vmatpush2.bf16.msra.mxu0 0
    %318 = vmatprep.subr.bf16.mxu0 0
    %319 = vmatpush2.bf16.msra.mxu0 0
    %320 = vmatprep.subr.bf16.mxu0 0
    %321 = vmatpush2.bf16.msra.mxu0 0
    %322 = vmatprep.subr.bf16.mxu0 0
    %323 = vmatpush2.bf16.msra.mxu0 0
    %324 = vmatprep.subr.bf16.mxu0 0
    %325 = vmatpush2.bf16.msra.mxu0 0
    %326 = vmatprep.mubr.bf16.mxu0 0
    %327 = vmatmul.mubr.bf16.gmra.mxu0 %v239
    %v328 = vpop.f32.mrf.mxu0
    %v329 = vadd.f32 0.0, %v328
    %v330 = vpop.f32.mrf.mxu0
    %v331 = vpop.f32.mrf.mxu0
    %v332 = vadd.f32 0.0, %v331
    %v333 = vpop.f32.mrf.mxu0
    %334 = vdwg.mxu0
    %v335 = vld [vmem:[%s8] sm:$0xf]
    %v336 = vld [vmem:[%s8 + $0x4] sm:$0xf]
    %v337 = vld [vmem:[%s8 + $0x8] sm:$0xf]
    %v338 = vld [vmem:[%s8 + $0xc] sm:$0xf]
    %v339 = vld [vmem:[%s8 + $0x10] sm:$0xf]
    %v340 = vld [vmem:[%s8 + $0x14] sm:$0xf]
    %v341 = vld [vmem:[%s8 + $0x18] sm:$0xf]
    %v342 = vld [vmem:[%s8 + $0x1c] sm:$0xf]
    %v347 = vunpack.c.l.b16 %v335
    %v348 = vunpack.c.l.b16 %v336
    %v349 = vunpack.c.l.b16 %v337
    %v350 = vunpack.c.l.b16 %v338
    %v351 = vpack.c.b16 %v348, %v347
    %v352 = vpack.c.b16 %v350, %v349
    %355 = vmatprep.subr.bf16.mxu0 0
    %356 = vmatpush1.bf16.msra.mxu0 0
    %357 = vmatprep.subr.bf16.mxu0 0
    %358 = vmatpush1.bf16.msra.mxu0 0
    %359 = vmatprep.subr.bf16.mxu0 0
    %360 = vmatpush1.bf16.msra.mxu0 0
    %361 = vmatprep.subr.bf16.mxu0 0
    %362 = vmatpush1.bf16.msra.mxu0 0
    %363 = vmatprep.subr.bf16.mxu0 0
    %364 = vmatpush1.bf16.msra.mxu0 0
    %365 = vmatprep.subr.bf16.mxu0 0
    %366 = vmatpush1.bf16.msra.mxu0 0
    %367 = vmatprep.subr.bf16.mxu0 0
    %368 = vmatpush1.bf16.msra.mxu0 %v352
    %369 = vmatprep.subr.bf16.mxu0 0
    %370 = vmatpush1.bf16.msra.mxu0 %v351
    %371 = vmatprep.subr.bf16.mxu0 0
    %372 = vmatpush2.bf16.msra.mxu0 0
    %373 = vmatprep.subr.bf16.mxu0 0
    %374 = vmatpush2.bf16.msra.mxu0 0
    %375 = vmatprep.subr.bf16.mxu0 0
    %376 = vmatpush2.bf16.msra.mxu0 0
    %377 = vmatprep.subr.bf16.mxu0 0
    %378 = vmatpush2.bf16.msra.mxu0 0
    %379 = vmatprep.subr.bf16.mxu0 0
    %380 = vmatpush2.bf16.msra.mxu0 0
    %381 = vmatprep.subr.bf16.mxu0 0
    %382 = vmatpush2.bf16.msra.mxu0 0
    %383 = vmatprep.subr.bf16.mxu0 0
    %384 = vmatpush2.bf16.msra.mxu0 0
    %385 = vmatprep.subr.bf16.mxu0 0
    %386 = vmatpush2.bf16.msra.mxu0 0
    %387 = vmatprep.mubr.bf16.mxu0 0
    %388 = vmatmul.mubr.bf16.gmra.mxu0 %v239
    %v389 = vpop.f32.mrf.mxu0
    %v390 = vadd.f32 0.0, %v389
    %v391 = vpop.f32.mrf.mxu0
    %v392 = vpop.f32.mrf.mxu0
    %v393 = vadd.f32 0.0, %v392
    %v394 = vpop.f32.mrf.mxu0
    %395 = vdwg.mxu0
    %v400 = vunpack.c.l.b16 %v339
    %v401 = vunpack.c.l.b16 %v340
    %v402 = vunpack.c.l.b16 %v341
    %v403 = vunpack.c.l.b16 %v342
    %v404 = vpack.c.b16 %v401, %v400
    %v405 = vpack.c.b16 %v403, %v402
    %408 = vmatprep.subr.bf16.mxu0 0
    %409 = vmatpush1.bf16.msra.mxu0 0
    %410 = vmatprep.subr.bf16.mxu0 0
    %411 = vmatpush1.bf16.msra.mxu0 0
    %412 = vmatprep.subr.bf16.mxu0 0
    %413 = vmatpush1.bf16.msra.mxu0 0
    %414 = vmatprep.subr.bf16.mxu0 0
    %415 = vmatpush1.bf16.msra.mxu0 0
    %416 = vmatprep.subr.bf16.mxu0 0
    %417 = vmatpush1.bf16.msra.mxu0 0
    %418 = vmatprep.subr.bf16.mxu0 0
    %419 = vmatpush1.bf16.msra.mxu0 0
    %420 = vmatprep.subr.bf16.mxu0 0
    %421 = vmatpush1.bf16.msra.mxu0 %v405
    %422 = vmatprep.subr.bf16.mxu0 0
    %423 = vmatpush1.bf16.msra.mxu0 %v404
    %424 = vmatprep.subr.bf16.mxu0 0
    %425 = vmatpush2.bf16.msra.mxu0 0
    %426 = vmatprep.subr.bf16.mxu0 0
    %427 = vmatpush2.bf16.msra.mxu0 0
    %428 = vmatprep.subr.bf16.mxu0 0
    %429 = vmatpush2.bf16.msra.mxu0 0
    %430 = vmatprep.subr.bf16.mxu0 0
    %431 = vmatpush2.bf16.msra.mxu0 0
    %432 = vmatprep.subr.bf16.mxu0 0
    %433 = vmatpush2.bf16.msra.mxu0 0
    %434 = vmatprep.subr.bf16.mxu0 0
    %435 = vmatpush2.bf16.msra.mxu0 0
    %436 = vmatprep.subr.bf16.mxu0 0
    %437 = vmatpush2.bf16.msra.mxu0 0
    %438 = vmatprep.subr.bf16.mxu0 0
    %439 = vmatpush2.bf16.msra.mxu0 0
    %440 = vmatprep.mubr.bf16.mxu0 0
    %441 = vmatmul.mubr.bf16.gmra.mxu0 %v239
    %v442 = vpop.f32.mrf.mxu0
    %v443 = vadd.f32 0.0, %v442
    %v444 = vpop.f32.mrf.mxu0
    %v445 = vpop.f32.mrf.mxu0
    %v446 = vadd.f32 0.0, %v445
    %v447 = vpop.f32.mrf.mxu0
    %448 = vdwg.mxu0
    %v449 = vpack.c.bf16 %v157, %v154
    %v450 = vpack.c.bf16 %v210, %v207
    %v453 = vunpack.c.l.b16 %v449
    %v454 = vunpack.c.h.b16 %v449
    %v455 = vunpack.c.l.b16 %v450
    %v456 = vunpack.c.h.b16 %v450
    %v457 = vpack.c.b16 %v453, %v453
    %v458 = vpack.c.b16 %v454, %v454
    %v459 = vpack.c.b16 %v455, %v455
    %v460 = vpack.c.b16 %v456, %v456
    %v461 = vpack.c.bf16 %v279, %v276
    %v462 = vpack.c.bf16 %v332, %v329
    %v465 = vunpack.c.l.b16 %v461
    %v466 = vunpack.c.h.b16 %v461
    %v467 = vunpack.c.l.b16 %v462
    %v468 = vunpack.c.h.b16 %v462
    %v469 = vpack.c.b16 %v465, %v465
    %v470 = vpack.c.b16 %v466, %v466
    %v471 = vpack.c.b16 %v467, %v467
    %v472 = vpack.c.b16 %v468, %v468
    %v473 = vpack.c.bf16 %v393, %v390
    %v474 = vpack.c.bf16 %v446, %v443
    %v477 = vunpack.c.l.b16 %v473
    %v478 = vunpack.c.h.b16 %v473
    %v479 = vunpack.c.l.b16 %v474
    %v480 = vunpack.c.h.b16 %v474
    %v481 = vpack.c.b16 %v477, %v477
    %v482 = vpack.c.b16 %v478, %v478
    %v483 = vpack.c.b16 %v479, %v479
    %v484 = vpack.c.b16 %v480, %v480
    %vm485 = vcmask 130048
    %v487 = vsel %vm485, %v457, 0
    %v490 = vsel %vm485, %v469, 0
    %492 = vmatprep.subr.bf16.mxu0 0
    %493 = vmatpush1.bf16.xpose.msra.mxu0 0
    %494 = vmatprep.subr.bf16.mxu0 0
    %495 = vmatpush1.bf16.xpose.msra.mxu0 0
    %496 = vmatprep.subr.bf16.mxu0 0
    %497 = vmatpush1.bf16.xpose.msra.mxu0 0
    %498 = vmatprep.subr.bf16.mxu0 0
    %499 = vmatpush1.bf16.xpose.msra.mxu0 0
    %500 = vmatprep.subr.bf16.mxu0 0
    %501 = vmatpush1.bf16.xpose.msra.mxu0 0
    %502 = vmatprep.subr.bf16.mxu0 0
    %503 = vmatpush1.bf16.xpose.msra.mxu0 0
    %504 = vmatprep.subr.bf16.mxu0 0
    %505 = vmatpush1.bf16.xpose.msra.mxu0 0
    %506 = vmatprep.subr.bf16.mxu0 0
    %507 = vmatpush1.bf16.xpose.msra.mxu0 %v490
    %508 = vmatprep.subr.bf16.mxu0 0
    %509 = vmatpush2.bf16.xpose.msra.mxu0 0
    %510 = vmatprep.subr.bf16.mxu0 0
    %511 = vmatpush2.bf16.xpose.msra.mxu0 0
    %512 = vmatprep.subr.bf16.mxu0 0
    %513 = vmatpush2.bf16.xpose.msra.mxu0 0
    %514 = vmatprep.subr.bf16.mxu0 0
    %515 = vmatpush2.bf16.xpose.msra.mxu0 0
    %516 = vmatprep.subr.bf16.mxu0 0
    %517 = vmatpush2.bf16.xpose.msra.mxu0 0
    %518 = vmatprep.subr.bf16.mxu0 0
    %519 = vmatpush2.bf16.xpose.msra.mxu0 0
    %520 = vmatprep.subr.bf16.mxu0 0
    %521 = vmatpush2.bf16.xpose.msra.mxu0 0
    %522 = vmatprep.subr.bf16.mxu0 0
    %523 = vmatpush2.bf16.xpose.msra.mxu0 0
    %524 = vmatprep.mubr.bf16.mxu0 0
    %525 = vmatmul.mubr.bf16.gmra.mxu0 %v487
    %v526 = vpop.f32.mrf.mxu0
    %v527 = vadd.f32 0.0, %v526
    %v528 = vpop.f32.mrf.mxu0
    %v529 = vpop.f32.mrf.mxu0
    %v530 = vpop.f32.mrf.mxu0
    %531 = vdwg.mxu0
    %v533 = vsel %vm485, %v458, 0
    %v536 = vsel %vm485, %v470, 0
    %538 = vmatprep.subr.bf16.mxu0 0
    %539 = vmatpush1.bf16.xpose.msra.mxu0 0
    %540 = vmatprep.subr.bf16.mxu0 0
    %541 = vmatpush1.bf16.xpose.msra.mxu0 0
    %542 = vmatprep.subr.bf16.mxu0 0
    %543 = vmatpush1.bf16.xpose.msra.mxu0 0
    %544 = vmatprep.subr.bf16.mxu0 0
    %545 = vmatpush1.bf16.xpose.msra.mxu0 0
    %546 = vmatprep.subr.bf16.mxu0 0
    %547 = vmatpush1.bf16.xpose.msra.mxu0 0
    %548 = vmatprep.subr.bf16.mxu0 0
    %549 = vmatpush1.bf16.xpose.msra.mxu0 0
    %550 = vmatprep.subr.bf16.mxu0 0
    %551 = vmatpush1.bf16.xpose.msra.mxu0 0
    %552 = vmatprep.subr.bf16.mxu0 0
    %553 = vmatpush1.bf16.xpose.msra.mxu0 %v536
    %554 = vmatprep.subr.bf16.mxu0 0
    %555 = vmatpush2.bf16.xpose.msra.mxu0 0
    %556 = vmatprep.subr.bf16.mxu0 0
    %557 = vmatpush2.bf16.xpose.msra.mxu0 0
    %558 = vmatprep.subr.bf16.mxu0 0
    %559 = vmatpush2.bf16.xpose.msra.mxu0 0
    %560 = vmatprep.subr.bf16.mxu0 0
    %561 = vmatpush2.bf16.xpose.msra.mxu0 0
    %562 = vmatprep.subr.bf16.mxu0 0
    %563 = vmatpush2.bf16.xpose.msra.mxu0 0
    %564 = vmatprep.subr.bf16.mxu0 0
    %565 = vmatpush2.bf16.xpose.msra.mxu0 0
    %566 = vmatprep.subr.bf16.mxu0 0
    %567 = vmatpush2.bf16.xpose.msra.mxu0 0
    %568 = vmatprep.subr.bf16.mxu0 0
    %569 = vmatpush2.bf16.xpose.msra.mxu0 0
    %570 = vmatprep.mubr.bf16.mxu0 0
    %571 = vmatmul.mubr.bf16.gmra.mxu0 %v533
    %v572 = vpop.f32.mrf.mxu0
    %v573 = vadd.f32 0.0, %v572
    %v574 = vpop.f32.mrf.mxu0
    %v575 = vpop.f32.mrf.mxu0
    %v576 = vpop.f32.mrf.mxu0
    %577 = vdwg.mxu0
    %v579 = vsel %vm485, %v459, 0
    %v582 = vsel %vm485, %v471, 0
    %584 = vmatprep.subr.bf16.mxu0 0
    %585 = vmatpush1.bf16.xpose.msra.mxu0 0
    %586 = vmatprep.subr.bf16.mxu0 0
    %587 = vmatpush1.bf16.xpose.msra.mxu0 0
    %588 = vmatprep.subr.bf16.mxu0 0
    %589 = vmatpush1.bf16.xpose.msra.mxu0 0
    %590 = vmatprep.subr.bf16.mxu0 0
    %591 = vmatpush1.bf16.xpose.msra.mxu0 0
    %592 = vmatprep.subr.bf16.mxu0 0
    %593 = vmatpush1.bf16.xpose.msra.mxu0 0
    %594 = vmatprep.subr.bf16.mxu0 0
    %595 = vmatpush1.bf16.xpose.msra.mxu0 0
    %596 = vmatprep.subr.bf16.mxu0 0
    %597 = vmatpush1.bf16.xpose.msra.mxu0 0
    %598 = vmatprep.subr.bf16.mxu0 0
    %599 = vmatpush1.bf16.xpose.msra.mxu0 %v582
    %600 = vmatprep.subr.bf16.mxu0 0
    %601 = vmatpush2.bf16.xpose.msra.mxu0 0
    %602 = vmatprep.subr.bf16.mxu0 0
    %603 = vmatpush2.bf16.xpose.msra.mxu0 0
    %604 = vmatprep.subr.bf16.mxu0 0
    %605 = vmatpush2.bf16.xpose.msra.mxu0 0
    %606 = vmatprep.subr.bf16.mxu0 0
    %607 = vmatpush2.bf16.xpose.msra.mxu0 0
    %608 = vmatprep.subr.bf16.mxu0 0
    %609 = vmatpush2.bf16.xpose.msra.mxu0 0
    %610 = vmatprep.subr.bf16.mxu0 0
    %611 = vmatpush2.bf16.xpose.msra.mxu0 0
    %612 = vmatprep.subr.bf16.mxu0 0
    %613 = vmatpush2.bf16.xpose.msra.mxu0 0
    %614 = vmatprep.subr.bf16.mxu0 0
    %615 = vmatpush2.bf16.xpose.msra.mxu0 0
    %616 = vmatprep.mubr.bf16.mxu0 0
    %617 = vmatmul.mubr.bf16.gmra.mxu0 %v579
    %v618 = vpop.f32.mrf.mxu0
    %v619 = vadd.f32 0.0, %v618
    %v620 = vpop.f32.mrf.mxu0
    %v621 = vpop.f32.mrf.mxu0
    %v622 = vpop.f32.mrf.mxu0
    %623 = vdwg.mxu0
    %v625 = vsel %vm485, %v460, 0
    %v628 = vsel %vm485, %v472, 0
    %630 = vmatprep.subr.bf16.mxu0 0
    %631 = vmatpush1.bf16.xpose.msra.mxu0 0
    %632 = vmatprep.subr.bf16.mxu0 0
    %633 = vmatpush1.bf16.xpose.msra.mxu0 0
    %634 = vmatprep.subr.bf16.mxu0 0
    %635 = vmatpush1.bf16.xpose.msra.mxu0 0
    %636 = vmatprep.subr.bf16.mxu0 0
    %637 = vmatpush1.bf16.xpose.msra.mxu0 0
    %638 = vmatprep.subr.bf16.mxu0 0
    %639 = vmatpush1.bf16.xpose.msra.mxu0 0
    %640 = vmatprep.subr.bf16.mxu0 0
    %641 = vmatpush1.bf16.xpose.msra.mxu0 0
    %642 = vmatprep.subr.bf16.mxu0 0
    %643 = vmatpush1.bf16.xpose.msra.mxu0 0
    %644 = vmatprep.subr.bf16.mxu0 0
    %645 = vmatpush1.bf16.xpose.msra.mxu0 %v628
    %646 = vmatprep.subr.bf16.mxu0 0
    %647 = vmatpush2.bf16.xpose.msra.mxu0 0
    %648 = vmatprep.subr.bf16.mxu0 0
    %649 = vmatpush2.bf16.xpose.msra.mxu0 0
    %650 = vmatprep.subr.bf16.mxu0 0
    %651 = vmatpush2.bf16.xpose.msra.mxu0 0
    %652 = vmatprep.subr.bf16.mxu0 0
    %653 = vmatpush2.bf16.xpose.msra.mxu0 0
    %654 = vmatprep.subr.bf16.mxu0 0
    %655 = vmatpush2.bf16.xpose.msra.mxu0 0
    %656 = vmatprep.subr.bf16.mxu0 0
    %657 = vmatpush2.bf16.xpose.msra.mxu0 0
    %658 = vmatprep.subr.bf16.mxu0 0
    %659 = vmatpush2.bf16.xpose.msra.mxu0 0
    %660 = vmatprep.subr.bf16.mxu0 0
    %661 = vmatpush2.bf16.xpose.msra.mxu0 0
    %662 = vmatprep.mubr.bf16.mxu0 0
    %663 = vmatmul.mubr.bf16.gmra.mxu0 %v625
    %v664 = vpop.f32.mrf.mxu0
    %v665 = vadd.f32 0.0, %v664
    %v666 = vpop.f32.mrf.mxu0
    %v667 = vpop.f32.mrf.mxu0
    %v668 = vpop.f32.mrf.mxu0
    %669 = vdwg.mxu0
    %v670 = vld [vmem:[%s2] sm:$0xff]
    %v671 = vld [vmem:[%s2 + $0x8] sm:$0xff]
    %v672 = vld [vmem:[%s3] sm:$0x1]
    %673 = vset.pattern.permute.xlu0 0
    %674 = vperm.xlu0 %673, %v670
    %v675 = vpop.permute.xlu0 %674
    %676 = vset.pattern.permute.xlu0 0
    %677 = vperm.xlu0 %676, %v671
    %v678 = vpop.permute.xlu0 %677
    %v679 = vlaneseq
    %v680 = vshrl.u32 %v679, 7
    %v681 = vsub.s32 0, %v680
    %v682 = vrot.slane %v672, %v681
    %vm683 = vcmp.eq.s32.totalorder %v675, %v682
    %vm684 = vcmp.eq.s32.totalorder %v678, %v682
    %v685 = vsel %vm683, %v527, -3.4028235e+38
    %v686 = vsel %vm684, %v573, -3.4028235e+38
    %v687 = vsel %vm683, %v619, -3.4028235e+38
    %v688 = vsel %vm684, %v665, -3.4028235e+38
    %vm689 = vcmask 64512
    %v690 = vsel %vm689, %v685, -inf
    %691 = vmax.xlane.f32.xlu0 %v690
    %v692 = vpop.xlane.xlu0 %691
    %v693 = vsel %vm689, %v686, -inf
    %694 = vmax.xlane.f32.xlu0 %v693
    %v695 = vpop.xlane.xlu0 %694
    %v696 = vsel %vm689, %v687, -inf
    %697 = vmax.xlane.f32.xlu0 %v696
    %v698 = vpop.xlane.xlu0 %697
    %v699 = vsel %vm689, %v688, -inf
    %700 = vmax.xlane.f32.xlu0 %v699
    %v701 = vpop.xlane.xlu0 %700
    %v702 = vsub.f32 %v685, %v692
    %v703 = vsub.f32 %v686, %v695
    %v704 = vsub.f32 %v687, %v698
    %v705 = vsub.f32 %v688, %v701
    %v706 = vmul.f32 %v702, 1.442695
    %v707 = vpow.pop %v706
    %v708 = vmul.f32 %v703, 1.442695
    %v709 = vpow.pop %v708
    %v710 = vmul.f32 %v704, 1.442695
    %v711 = vpow.pop %v710
    %v712 = vmul.f32 %v705, 1.442695
    %v713 = vpow.pop %v712
    %v714 = vsel %vm689, %v707, 0.0
    %715 = vadd.xlane.f32.xlu0 %v714
    %v716 = vpop.xlane.xlu0 %715
    %v717 = vsel %vm689, %v709, 0.0
    %718 = vadd.xlane.f32.xlu0 %v717
    %v719 = vpop.xlane.xlu0 %718
    %v720 = vsel %vm689, %v711, 0.0
    %721 = vadd.xlane.f32.xlu0 %v720
    %v722 = vpop.xlane.xlu0 %721
    %v723 = vsel %vm689, %v713, 0.0
    %724 = vadd.xlane.f32.xlu0 %v723
    %v725 = vpop.xlane.xlu0 %724
    %v726 = vrcp.pop %v716
    %v727 = vrcp.pop %v719
    %v728 = vrcp.pop %v722
    %v729 = vrcp.pop %v725
    %v730 = vmul.f32 %v707, %v726
    %v731 = vmul.f32 %v709, %v727
    %v732 = vmul.f32 %v711, %v728
    %v733 = vmul.f32 %v713, %v729
    %v734 = vpack.c.bf16 %v730, %v730
    %v735 = vpack.c.bf16 %v731, %v731
    %v736 = vpack.c.bf16 %v732, %v732
    %v737 = vpack.c.bf16 %v733, %v733
    %v739 = vsel %vm689, %v734, 0
    %vm741 = vcmask 1043456
    %v743 = vsel %vm741, %v481, 0
    %745 = vmatprep.subr.bf16.mxu0 0
    %746 = vmatpush1.bf16.msra.mxu0 0
    %747 = vmatprep.subr.bf16.mxu0 0
    %748 = vmatpush1.bf16.msra.mxu0 0
    %749 = vmatprep.subr.bf16.mxu0 0
    %750 = vmatpush1.bf16.msra.mxu0 0
    %751 = vmatprep.subr.bf16.mxu0 0
    %752 = vmatpush1.bf16.msra.mxu0 0
    %753 = vmatprep.subr.bf16.mxu0 0
    %754 = vmatpush1.bf16.msra.mxu0 0
    %755 = vmatprep.subr.bf16.mxu0 0
    %756 = vmatpush1.bf16.msra.mxu0 0
    %757 = vmatprep.subr.bf16.mxu0 0
    %758 = vmatpush1.bf16.msra.mxu0 0
    %759 = vmatprep.subr.bf16.mxu0 0
    %760 = vmatpush1.bf16.msra.mxu0 %v743
    %761 = vmatprep.subr.bf16.mxu0 0
    %762 = vmatpush2.bf16.msra.mxu0 0
    %763 = vmatprep.subr.bf16.mxu0 0
    %764 = vmatpush2.bf16.msra.mxu0 0
    %765 = vmatprep.subr.bf16.mxu0 0
    %766 = vmatpush2.bf16.msra.mxu0 0
    %767 = vmatprep.subr.bf16.mxu0 0
    %768 = vmatpush2.bf16.msra.mxu0 0
    %769 = vmatprep.subr.bf16.mxu0 0
    %770 = vmatpush2.bf16.msra.mxu0 0
    %771 = vmatprep.subr.bf16.mxu0 0
    %772 = vmatpush2.bf16.msra.mxu0 0
    %773 = vmatprep.subr.bf16.mxu0 0
    %774 = vmatpush2.bf16.msra.mxu0 0
    %775 = vmatprep.subr.bf16.mxu0 0
    %776 = vmatpush2.bf16.msra.mxu0 0
    %777 = vmatprep.mubr.bf16.mxu0 0
    %778 = vmatmul.mubr.bf16.gmra.mxu0 %v739
    %v779 = vpop.f32.mrf.mxu0
    %v780 = vadd.f32 0.0, %v779
    %v781 = vpop.f32.mrf.mxu0
    %v782 = vpop.f32.mrf.mxu0
    %v783 = vpop.f32.mrf.mxu0
    %784 = vdwg.mxu0
    %v786 = vsel %vm689, %v735, 0
    %v789 = vsel %vm741, %v482, 0
    %791 = vmatprep.subr.bf16.mxu0 0
    %792 = vmatpush1.bf16.msra.mxu0 0
    %793 = vmatprep.subr.bf16.mxu0 0
    %794 = vmatpush1.bf16.msra.mxu0 0
    %795 = vmatprep.subr.bf16.mxu0 0
    %796 = vmatpush1.bf16.msra.mxu0 0
    %797 = vmatprep.subr.bf16.mxu0 0
    %798 = vmatpush1.bf16.msra.mxu0 0
    %799 = vmatprep.subr.bf16.mxu0 0
    %800 = vmatpush1.bf16.msra.mxu0 0
    %801 = vmatprep.subr.bf16.mxu0 0
    %802 = vmatpush1.bf16.msra.mxu0 0
    %803 = vmatprep.subr.bf16.mxu0 0
    %804 = vmatpush1.bf16.msra.mxu0 0
    %805 = vmatprep.subr.bf16.mxu0 0
    %806 = vmatpush1.bf16.msra.mxu0 %v789
    %807 = vmatprep.subr.bf16.mxu0 0
    %808 = vmatpush2.bf16.msra.mxu0 0
    %809 = vmatprep.subr.bf16.mxu0 0
    %810 = vmatpush2.bf16.msra.mxu0 0
    %811 = vmatprep.subr.bf16.mxu0 0
    %812 = vmatpush2.bf16.msra.mxu0 0
    %813 = vmatprep.subr.bf16.mxu0 0
    %814 = vmatpush2.bf16.msra.mxu0 0
    %815 = vmatprep.subr.bf16.mxu0 0
    %816 = vmatpush2.bf16.msra.mxu0 0
    %817 = vmatprep.subr.bf16.mxu0 0
    %818 = vmatpush2.bf16.msra.mxu0 0
    %819 = vmatprep.subr.bf16.mxu0 0
    %820 = vmatpush2.bf16.msra.mxu0 0
    %821 = vmatprep.subr.bf16.mxu0 0
    %822 = vmatpush2.bf16.msra.mxu0 0
    %823 = vmatprep.mubr.bf16.mxu0 0
    %824 = vmatmul.mubr.bf16.gmra.mxu0 %v786
    %v825 = vpop.f32.mrf.mxu0
    %v826 = vadd.f32 0.0, %v825
    %v827 = vpop.f32.mrf.mxu0
    %v828 = vpop.f32.mrf.mxu0
    %v829 = vpop.f32.mrf.mxu0
    %830 = vdwg.mxu0
    %v832 = vsel %vm689, %v736, 0
    %v835 = vsel %vm741, %v483, 0
    %837 = vmatprep.subr.bf16.mxu0 0
    %838 = vmatpush1.bf16.msra.mxu0 0
    %839 = vmatprep.subr.bf16.mxu0 0
    %840 = vmatpush1.bf16.msra.mxu0 0
    %841 = vmatprep.subr.bf16.mxu0 0
    %842 = vmatpush1.bf16.msra.mxu0 0
    %843 = vmatprep.subr.bf16.mxu0 0
    %844 = vmatpush1.bf16.msra.mxu0 0
    %845 = vmatprep.subr.bf16.mxu0 0
    %846 = vmatpush1.bf16.msra.mxu0 0
    %847 = vmatprep.subr.bf16.mxu0 0
    %848 = vmatpush1.bf16.msra.mxu0 0
    %849 = vmatprep.subr.bf16.mxu0 0
    %850 = vmatpush1.bf16.msra.mxu0 0
    %851 = vmatprep.subr.bf16.mxu0 0
    %852 = vmatpush1.bf16.msra.mxu0 %v835
    %853 = vmatprep.subr.bf16.mxu0 0
    %854 = vmatpush2.bf16.msra.mxu0 0
    %855 = vmatprep.subr.bf16.mxu0 0
    %856 = vmatpush2.bf16.msra.mxu0 0
    %857 = vmatprep.subr.bf16.mxu0 0
    %858 = vmatpush2.bf16.msra.mxu0 0
    %859 = vmatprep.subr.bf16.mxu0 0
    %860 = vmatpush2.bf16.msra.mxu0 0
    %861 = vmatprep.subr.bf16.mxu0 0
    %862 = vmatpush2.bf16.msra.mxu0 0
    %863 = vmatprep.subr.bf16.mxu0 0
    %864 = vmatpush2.bf16.msra.mxu0 0
    %865 = vmatprep.subr.bf16.mxu0 0
    %866 = vmatpush2.bf16.msra.mxu0 0
    %867 = vmatprep.subr.bf16.mxu0 0
    %868 = vmatpush2.bf16.msra.mxu0 0
    %869 = vmatprep.mubr.bf16.mxu0 0
    %870 = vmatmul.mubr.bf16.gmra.mxu0 %v832
    %v871 = vpop.f32.mrf.mxu0
    %v872 = vadd.f32 0.0, %v871
    %v873 = vpop.f32.mrf.mxu0
    %v874 = vpop.f32.mrf.mxu0
    %v875 = vpop.f32.mrf.mxu0
    %876 = vdwg.mxu0
    %v878 = vsel %vm689, %v737, 0
    %v881 = vsel %vm741, %v484, 0
    %883 = vmatprep.subr.bf16.mxu0 0
    %884 = vmatpush1.bf16.msra.mxu0 0
    %885 = vmatprep.subr.bf16.mxu0 0
    %886 = vmatpush1.bf16.msra.mxu0 0
    %887 = vmatprep.subr.bf16.mxu0 0
    %888 = vmatpush1.bf16.msra.mxu0 0
    %889 = vmatprep.subr.bf16.mxu0 0
    %890 = vmatpush1.bf16.msra.mxu0 0
    %891 = vmatprep.subr.bf16.mxu0 0
    %892 = vmatpush1.bf16.msra.mxu0 0
    %893 = vmatprep.subr.bf16.mxu0 0
    %894 = vmatpush1.bf16.msra.mxu0 0
    %895 = vmatprep.subr.bf16.mxu0 0
    %896 = vmatpush1.bf16.msra.mxu0 0
    %897 = vmatprep.subr.bf16.mxu0 0
    %898 = vmatpush1.bf16.msra.mxu0 %v881
    %899 = vmatprep.subr.bf16.mxu0 0
    %900 = vmatpush2.bf16.msra.mxu0 0
    %901 = vmatprep.subr.bf16.mxu0 0
    %902 = vmatpush2.bf16.msra.mxu0 0
    %903 = vmatprep.subr.bf16.mxu0 0
    %904 = vmatpush2.bf16.msra.mxu0 0
    %905 = vmatprep.subr.bf16.mxu0 0
    %906 = vmatpush2.bf16.msra.mxu0 0
    %907 = vmatprep.subr.bf16.mxu0 0
    %908 = vmatpush2.bf16.msra.mxu0 0
    %909 = vmatprep.subr.bf16.mxu0 0
    %910 = vmatpush2.bf16.msra.mxu0 0
    %911 = vmatprep.subr.bf16.mxu0 0
    %912 = vmatpush2.bf16.msra.mxu0 0
    %913 = vmatprep.subr.bf16.mxu0 0
    %914 = vmatpush2.bf16.msra.mxu0 0
    %915 = vmatprep.mubr.bf16.mxu0 0
    %916 = vmatmul.mubr.bf16.gmra.mxu0 %v878
    %v917 = vpop.f32.mrf.mxu0
    %v918 = vadd.f32 0.0, %v917
    %v919 = vpop.f32.mrf.mxu0
    %v920 = vpop.f32.mrf.mxu0
    %v921 = vpop.f32.mrf.mxu0
    %922 = vdwg.mxu0
    %v923 = vpack.c.bf16 %v826, %v780
    %v925 = vunpack.c.l.b16 %v923
    %v926 = vunpack.c.h.b16 %v923
    %v927 = vpack.c.b16 %v925, %v925
    %v928 = vpack.c.b16 %v926, %v926
    %vm931 = vcmask 125952
    %932 = vst.msk [vmem:[#allocation2] sm:$0xf] %vm931, %v927
    %933 = vst.msk [vmem:[#allocation2 + $0x4] sm:$0xf] %vm931, %v928
    %v934 = vpack.c.bf16 %v918, %v872
    %v936 = vunpack.c.l.b16 %v934
    %v937 = vunpack.c.h.b16 %v934
    %v938 = vpack.c.b16 %v936, %v936
    %v939 = vpack.c.b16 %v937, %v937
    %940 = vrot.lane.b32.xlu0 %v938, 16
    %v941 = vpop.permute.xlu0 %940
    %942 = vrot.lane.b32.xlu0 %v939, 16
    %v943 = vpop.permute.xlu0 %942
    %vm946 = vcmask 257152
    %947 = vst.msk [vmem:[#allocation2] sm:$0xf] %vm946, %v941
    %948 = vst.msk [vmem:[#allocation2 + $0x4] sm:$0xf] %vm946, %v943
    %v949 = vld [vmem:[#allocation2] sm:$0xf]
    %v950 = vld [vmem:[#allocation2 + $0x4] sm:$0xf]
    %v951 = vld [vmem:[%s9] sm:$0xf]
    %v952 = vld [vmem:[%s9 + $0x4] sm:$0xf]
    %v953 = vld [vmem:[%s9 + $0x8] sm:$0xf]
    %v954 = vld [vmem:[%s9 + $0xc] sm:$0xf]
    %v957 = vunpack.c.l.b16 %v949
    %v958 = vunpack.c.l.b16 %v950
    %v959 = vpack.c.b16 %v958, %v957
    %v964 = vunpack.c.l.b16 %v951
    %v965 = vunpack.c.l.b16 %v952
    %v966 = vunpack.c.l.b16 %v953
    %v967 = vunpack.c.l.b16 %v954
    %v968 = vpack.c.b16 %v965, %v964
    %v969 = vpack.c.b16 %v967, %v966
    %v973 = vsel %vm41, %v959, 0
    %975 = vmatprep.subr.bf16.mxu0 0
    %976 = vmatpush1.bf16.msra.mxu0 0
    %977 = vmatprep.subr.bf16.mxu0 0
    %978 = vmatpush1.bf16.msra.mxu0 0
    %979 = vmatprep.subr.bf16.mxu0 0
    %980 = vmatpush1.bf16.msra.mxu0 0
    %981 = vmatprep.subr.bf16.mxu0 0
    %982 = vmatpush1.bf16.msra.mxu0 0
    %983 = vmatprep.subr.bf16.mxu0 0
    %984 = vmatpush1.bf16.msra.mxu0 0
    %985 = vmatprep.subr.bf16.mxu0 0
    %986 = vmatpush1.bf16.msra.mxu0 0
    %987 = vmatprep.subr.bf16.mxu0 0
    %988 = vmatpush1.bf16.msra.mxu0 %v969
    %989 = vmatprep.subr.bf16.mxu0 0
    %990 = vmatpush1.bf16.msra.mxu0 %v968
    %991 = vmatprep.subr.bf16.mxu0 0
    %992 = vmatpush2.bf16.msra.mxu0 0
    %993 = vmatprep.subr.bf16.mxu0 0
    %994 = vmatpush2.bf16.msra.mxu0 0
    %995 = vmatprep.subr.bf16.mxu0 0
    %996 = vmatpush2.bf16.msra.mxu0 0
    %997 = vmatprep.subr.bf16.mxu0 0
    %998 = vmatpush2.bf16.msra.mxu0 0
    %999 = vmatprep.subr.bf16.mxu0 0
    %1000 = vmatpush2.bf16.msra.mxu0 0
    %1001 = vmatprep.subr.bf16.mxu0 0
    %1002 = vmatpush2.bf16.msra.mxu0 0
    %1003 = vmatprep.subr.bf16.mxu0 0
    %1004 = vmatpush2.bf16.msra.mxu0 0
    %1005 = vmatprep.subr.bf16.mxu0 0
    %1006 = vmatpush2.bf16.msra.mxu0 0
    %1007 = vmatprep.mubr.bf16.mxu0 0
    %1008 = vmatmul.mubr.bf16.gmra.mxu0 %v973
    %v1009 = vpop.f32.mrf.mxu0
    %v1010 = vadd.f32 0.0, %v1009
    %v1011 = vpop.f32.mrf.mxu0
    %v1012 = vpop.f32.mrf.mxu0
    %v1013 = vadd.f32 0.0, %v1012
    %v1014 = vpop.f32.mrf.mxu0
    %1015 = vdwg.mxu0
    %vm1016 = vcmp.eq.s32.totalorder %v670, 0
    %vm1017 = vcmp.eq.s32.totalorder %v671, 0
    %v1018 = vsel %vm1016, 1, 0
    %v1019 = vsel %vm1017, 1, 0
    %1020 = vset.pattern.permute.xlu0 0
    %1021 = vperm.xlu0 %1020, %v1018
    %v1022 = vpop.permute.xlu0 %1021
    %1023 = vset.pattern.permute.xlu0 0
    %1024 = vperm.xlu0 %1023, %v1019
    %v1025 = vpop.permute.xlu0 %1024
    %vm1026 = vcmp.eq.s32.totalorder %v1022, 1
    %vm1027 = vcmp.eq.s32.totalorder %v1025, 1
    %v1028 = vsel %vm1026, 0.0, %v1010
    %v1029 = vsel %vm1027, 0.0, %v1013
    %1030 = vst.msk [vmem:[#allocation3] sm:$0xff] %vm41, %v1028
    %1031 = vst.msk [vmem:[#allocation3 + $0x8] sm:$0xff] %vm41, %v1029
    // Predicated region
    $region42: #{tpu_custom_call.1} parent=1 // pred_check
      _
    $region43: #{tpu_custom_call.1} parent=1 // pred_check_branch
      %1033 = sbr.rel (0) target = $region45
    $region44: #{tpu_custom_call.1} parent=1 // pred_region
      %s1035 = ssub.s32 256, 256
      %1036 = vsyncadd [#allocation4], %s1035
      %s1037 = sshll.u32 [#allocation3], 4
      %s1038 = int_to_ptr.vmem [resolvable:$true] %s1037
      %1043 = dma.vmem_to_hbm [thread:$0]  %s1038, 256, %s10, [#allocation4], 128, 128, 8
    $region45: #{tpu_custom_call.1} parent=1 // pred_fallthru
      _
    // Predicated region
    $region46: #{tpu_custom_call.1} parent=1 // pred_check
      _
    $region47: #{tpu_custom_call.1} parent=1 // pred_check_branch
      %1045 = sbr.rel (0) target = $region49
    $region48: #{tpu_custom_call.1} parent=1 // pred_region
      %1046 = dma.done [#allocation4], 256
    $region49: #{tpu_custom_call.1} parent=1 // pred_fallthru
      _
    %1047 = vsyncpa [#allocation4], 1

</llo_original>
